<compile_context>
chip_gen: v7x
topology: tpu7x:2x2x1
jax: 0.10.0
libtpu: 0.0.40
codegen_flags: <defaults>
</compile_context>

<pallas_src>
import functools
import math

import jax
import jax.numpy as jnp
from jax import lax
from jax.experimental import pallas as pl
from jax.experimental.pallas import tpu as pltpu

_NEG_INF = -1e30                        # finite "-inf" (avoids NaN from inf - inf)
_LINEAR_VMEM = 32 * 1024 * 1024
_ATTN_VMEM_BUDGET = 36 * 1024 * 1024    # conservative: v7x has 64 MiB physical VMEM
_ATTN_VMEM_LIMIT = 48 * 1024 * 1024     # < 64 MiB, so safe on v5e/v6e/v7x


# ----------------------------------------------------------------------------
# helpers
# ----------------------------------------------------------------------------
def _round_up(x, m):
    return ((x + m - 1) // m) * m


def _pad2(x, rows, cols):
    r, c = x.shape
    if r == rows and c == cols:
        return x
    return jnp.pad(x, ((0, rows - r), (0, cols - c)))


def _pad1(x, size):
    (n,) = x.shape
    if n == size:
        return x
    return jnp.pad(x, (0, size - n))


def _choose_query_tile(rows_p, pref=256):
    """rows_p is a multiple of 128.  Pick a tile (multiple of 64, <= pref) that
    divides rows_p, preferring >=128 tiles with an EVEN tile count so the
    'parallel' query axis load-balances across v7x's two TensorCores."""
    if rows_p <= 128:
        return rows_p
    best_key, best_t = (False, 0), 128
    for t in range(64, min(pref, rows_p) + 1, 64):
        if rows_p % t:
            continue
        even = (rows_p // t) % 2 == 0
        key = (t >= 128 and even, t)
        if key > best_key:
            best_key, best_t = key, t
    return best_t


def _choose_key_tile(rows_p, pref=512):
    """Largest multiple-of-128 divisor of rows_p that is <= pref."""
    if rows_p <= pref:
        return rows_p
    best = 128
    for t in range(128, pref + 1, 128):
        if rows_p % t == 0:
            best = t
    return best


def _attn_vmem_bytes(tq, tk, dq_p, h_p, do_p, cd_bytes):
    """Conservative VMEM estimate for the attention kernel at tile sizes (tq, tk)."""
    f32 = 4
    dbl = 2  # pipeline double-buffering
    return (
        dbl * tq * dq_p * f32          # raw Q tile
        + dbl * dq_p * h_p * f32       # Wq (constant index; counted x2 anyway)
        + dbl * h_p * f32              # bq
        + dbl * tk * h_p * cd_bytes    # lk tile
        + dbl * tk * do_p * cd_bytes   # lv tile
        + dbl * tk * f32               # key padding bias
        + dbl * tq * do_p * f32        # output tile
        + tq * h_p * cd_bytes          # fused-projection lq scratch
        + 2 * tq * f32                 # running max / denom
        + tq * do_p * f32              # f32 accumulator
        + 3 * tq * tk * f32            # score / prob temporaries (headroom)
    )


def _choose_kv_tile(m_p, tq, dq_p, h_p, do_p, cd_bytes):
    """Largest multiple-of-128 divisor of m_p whose total VMEM footprint fits the
    budget.  If m_p itself fits, K/V become effectively VMEM-resident (DMA'd once,
    reused by every query tile)."""
    best = 128
    t = 128
    while t <= m_p:
        if m_p % t == 0 and _attn_vmem_bytes(tq, t, dq_p, h_p, do_p, cd_bytes) <= _ATTN_VMEM_BUDGET:
            best = t
        t += 128
    return best


# ----------------------------------------------------------------------------
# Linear projection kernel:  out = x @ W + b   (row-tiled, W/b VMEM-resident)
# ----------------------------------------------------------------------------
def _linear_kernel(x_ref, w_ref, b_ref, o_ref):
    acc = jnp.dot(x_ref[...], w_ref[...], preferred_element_type=jnp.float32)
    o_ref[...] = (acc + b_ref[...]).astype(o_ref.dtype)


def _linear(x, w, b2d, *, row_block, out_dtype):
    rows, d_in = x.shape
    d_out = w.shape[1]
    return pl.pallas_call(
        _linear_kernel,
        out_shape=jax.ShapeDtypeStruct((rows, d_out), out_dtype),
        grid=(rows // row_block,),
        in_specs=[
            pl.BlockSpec((row_block, d_in), lambda i: (i, 0)),  # x row tile
            pl.BlockSpec((d_in, d_out), lambda i: (0, 0)),      # W (small, resident)
            pl.BlockSpec((1, d_out), lambda i: (0, 0)),         # bias (resident)
        ],
        out_specs=pl.BlockSpec((row_block, d_out), lambda i: (i, 0)),
        compiler_params=pltpu.CompilerParams(
            dimension_semantics=("parallel",),
            vmem_limit_bytes=_LINEAR_VMEM,
        ),
    )(x, w, b2d)


# ----------------------------------------------------------------------------
# Flash-style attention kernel with fused Q projection (online softmax over keys)
# ----------------------------------------------------------------------------
def _attn_kernel(q_ref, wq_ref, bq_ref, k_ref, v_ref, *rest,
                 scale, has_bias, approx_recip):
    if has_bias:
        bias_ref, o_ref, lq_sc, m_sc, l_sc, acc_sc = rest
    else:
        o_ref, lq_sc, m_sc, l_sc, acc_sc = rest

    j = pl.program_id(1)

    @pl.when(j == 0)
    def _init():
        # Fused Q projection: each query tile is visited once, so this runs exactly
        # once per tile and lq never round-trips through HBM.
        lq = jnp.dot(q_ref[...], wq_ref[...], preferred_element_type=jnp.float32)
        lq_sc[...] = (lq + bq_ref[...]).astype(lq_sc.dtype)
        m_sc[...] = jnp.full_like(m_sc, _NEG_INF)
        l_sc[...] = jnp.zeros_like(l_sc)
        acc_sc[...] = jnp.zeros_like(acc_sc)

    # scores = lq @ lk.T  (contract on hidden dim; no materialized transpose).
    s = lax.dot_general(
        lq_sc[...], k_ref[...],
        dimension_numbers=(((1,), (1,)), ((), ())),
        preferred_element_type=jnp.float32,
    )
    if has_bias:
        s = s + bias_ref[...]  # 0 for valid keys, -1e30 for zero-padded key rows

    m_prev = m_sc[...]
    m_new = jnp.maximum(m_prev, s.max(axis=-1, keepdims=True))
    alpha = jnp.exp(m_prev - m_new)
    p = jnp.exp(s - m_new)
    l_sc[...] = alpha * l_sc[...] + p.sum(axis=-1, keepdims=True)
    acc_sc[...] = alpha * acc_sc[...] + jnp.dot(
        p.astype(v_ref.dtype), v_ref[...], preferred_element_type=jnp.float32)
    m_sc[...] = m_new

    @pl.when(j == pl.num_programs(1) - 1)
    def _finalize():
        # softmax normalize + the spec's post-softmax 1/sqrt(hidden) scale, folded
        # into one (tq,1) factor before the broadcast multiply.
        inv_l = pl.reciprocal(l_sc[...], approx=approx_recip)
        o_ref[...] = (acc_sc[...] * (inv_l * scale)).astype(o_ref.dtype)


def _attention(q_p, wq_p, bq_p, lk, lv, key_bias, *,
               tq, tk, scale, compute_dtype, approx_recip):
    n_p, dq_p = q_p.shape
    h_p = wq_p.shape[1]
    m_p, do_p = lv.shape
    has_bias = key_bias is not None

    kernel = functools.partial(_attn_kernel, scale=scale,
                               has_bias=has_bias, approx_recip=approx_recip)
    in_specs = [
        pl.BlockSpec((tq, dq_p), lambda i, j: (i, 0)),    # raw Q tile (f32)
        pl.BlockSpec((dq_p, h_p), lambda i, j: (0, 0)),   # Wq (resident)
        pl.BlockSpec((1, h_p), lambda i, j: (0, 0)),      # bq (resident)
        pl.BlockSpec((tk, h_p), lambda i, j: (j, 0)),     # lk tile
        pl.BlockSpec((tk, do_p), lambda i, j: (j, 0)),    # lv tile
    ]
    args = [q_p, wq_p, bq_p, lk, lv]
    if has_bias:
        in_specs.append(pl.BlockSpec((1, tk), lambda i, j: (0, j)))  # key mask bias
        args.append(key_bias)

    return pl.pallas_call(
        kernel,
        out_shape=jax.ShapeDtypeStruct((n_p, do_p), jnp.float32),
        grid=(n_p // tq, m_p // tk),   # query axis parallel; key (reduction) axis last
        in_specs=in_specs,
        out_specs=pl.BlockSpec((tq, do_p), lambda i, j: (i, 0)),
        scratch_shapes=[
            pltpu.VMEM((tq, h_p), compute_dtype),  # fused-projection lq tile
            pltpu.VMEM((tq, 1), jnp.float32),      # running max
            pltpu.VMEM((tq, 1), jnp.float32),      # running denom
            pltpu.VMEM((tq, do_p), jnp.float32),   # f32 accumulator
        ],
        compiler_params=pltpu.CompilerParams(
            dimension_semantics=("parallel", "arbitrary"),
            vmem_limit_bytes=_ATTN_VMEM_LIMIT,
        ),
    )(*args)


# ----------------------------------------------------------------------------
# Module forward
# ----------------------------------------------------------------------------
def qkv_attention(input_query, input_key, input_value, params, *,
                  compute_dtype=jnp.bfloat16):
    """QKVAttention.forward: softmax(lq @ lk.T) / sqrt(h) @ lv (dropout = eval identity).

    compute_dtype controls the MXU operand dtype for the attention matmuls
    (softmax math and accumulation stay f32).  Use jnp.float32 for bit-faithful
    parity with the PyTorch f32 module.
    """
    n, dq = input_query.shape
    m, dk = input_key.shape
    m2, dv = input_value.shape
    assert m == m2, "key and value must share the first dimension"

    wq, bq = params["wq"], params["bq"]
    wk, bk = params["wk"], params["bk"]
    wv, bv = params["wv"], params["bv"]
    hidden_dim = wq.shape[1]
    output_dim = wv.shape[1]

    # Minimal row padding (multiple of 128), lane-dense feature padding (multiple
    # of 128).  Padded feature columns contribute 0 to every dot product; padded
    # key rows are masked with an additive -1e30 bias; padded query rows are
    # sliced away at the end.
    n_p = _round_up(n, 128)
    m_p = _round_up(m, 128)
    dq_p = _round_up(dq, 128)
    dk_p = _round_up(dk, 128)
    dv_p = _round_up(dv, 128)
    h_p = _round_up(hidden_dim, 128)
    do_p = _round_up(output_dim, 128)

    cd_bytes = jnp.dtype(compute_dtype).itemsize
    tq = _choose_query_tile(n_p)
    tk = _choose_kv_tile(m_p, tq, dq_p, h_p, do_p, cd_bytes)

    q_p = _pad2(input_query.astype(jnp.float32), n_p, dq_p)
    k_p = _pad2(input_key.astype(jnp.float32), m_p, dk_p)
    v_p = _pad2(input_value.astype(jnp.float32), m_p, dv_p)
    wq_p = _pad2(wq, dq_p, h_p)
    wk_p = _pad2(wk, dk_p, h_p)
    wv_p = _pad2(wv, dv_p, do_p)
    bq_p = _pad1(bq, h_p).reshape(1, h_p)
    bk_p = _pad1(bk, h_p).reshape(1, h_p)
    bv_p = _pad1(bv, do_p).reshape(1, do_p)

    # K/V projections computed exactly once, emitted directly in compute_dtype.
    # (The Q projection is fused into the attention kernel.)
    proj_block = _choose_key_tile(m_p, 512)
    lk = _linear(k_p, wk_p, bk_p, row_block=proj_block, out_dtype=compute_dtype)
    lv = _linear(v_p, wv_p, bv_p, row_block=proj_block, out_dtype=compute_dtype)

    # Additive key-padding mask, built only when m is not 128-aligned.
    if m != m_p:
        key_bias = jnp.where(jnp.arange(m_p) < m, 0.0, _NEG_INF)
        key_bias = key_bias.astype(jnp.float32).reshape(1, m_p)
    else:
        key_bias = None

    approx_recip = jnp.dtype(compute_dtype) != jnp.dtype(jnp.float32)
    out_p = _attention(q_p, wq_p, bq_p, lk, lv, key_bias,
                       tq=tq, tk=tk, scale=1.0 / math.sqrt(hidden_dim),
                       compute_dtype=compute_dtype, approx_recip=approx_recip)
    # TODO(synk): nn.Dropout(p=dropout_rate) is identity in eval mode; training-mode
    # dropout (pltpu.prng_random_bits mask + 1/(1-p) scale) is not applied here.
    return out_p[:n, :output_dim]


def init_qkv_params(key, query_dim, key_dim, value_dim, hidden_dim, output_dim):
    """nn.Linear-style init: weight/bias ~ U(-1/sqrt(fan_in), 1/sqrt(fan_in))."""
    ks = jax.random.split(key, 6)

    def lin(kw, kb, d_in, d_out):
        bound = 1.0 / math.sqrt(d_in)
        w = jax.random.uniform(kw, (d_in, d_out), jnp.float32, -bound, bound)
        b = jax.random.uniform(kb, (d_out,), jnp.float32, -bound, bound)
        return w, b

    wq, bq = lin(ks[0], ks[1], query_dim, hidden_dim)
    wk, bk = lin(ks[2], ks[3], key_dim, hidden_dim)
    wv, bv = lin(ks[4], ks[5], value_dim, output_dim)
    return {"wq": wq, "bq": bq, "wk": wk, "bk": bk, "wv": wv, "bv": bv}


if __name__ == "__main__":
    key = jax.random.PRNGKey(0)
    kq, kk, kv_, kp = jax.random.split(key, 4)

    # Small but multi-tile / non-aligned shapes (exercise padding + key masking).
    n, m = 300, 260
    query_dim, key_dim, value_dim = 40, 24, 56
    hidden_dim, output_dim = 64, 96

    q = jax.random.normal(kq, (n, query_dim), jnp.float32)
    k = jax.random.normal(kk, (m, key_dim), jnp.float32)
    v = jax.random.normal(kv_, (m, value_dim), jnp.float32)
    params = init_qkv_params(kp, query_dim, key_dim, value_dim, hidden_dim, output_dim)

    def reference(compute_dtype):
        # Exact PyTorch math; for bf16 mode the projection outputs are rounded to
        # bf16 exactly as the kernel does (softmax/accumulation stay f32).
        f32 = jnp.float32
        lq = (q @ params["wq"] + params["bq"]).astype(compute_dtype).astype(f32)
        lk = (k @ params["wk"] + params["bk"]).astype(compute_dtype).astype(f32)
        lv = (v @ params["wv"] + params["bv"]).astype(compute_dtype).astype(f32)
        score = jax.nn.softmax(lq @ lk.T, axis=-1) / math.sqrt(hidden_dim)
        return score @ lv

    # Exact-math path (matches the f32 PyTorch module).
    out_f32 = qkv_attention(q, k, v, params, compute_dtype=jnp.float32)
    jax.block_until_ready(out_f32)
    ref_f32 = reference(jnp.float32)
    assert out_f32.shape == (n, output_dim)
    err32 = float(jnp.max(jnp.abs(out_f32 - ref_f32)))
    assert jnp.allclose(out_f32, ref_f32, atol=1e-4, rtol=1e-4), f"f32 max abs err {err32}"

    # Default fast path (bf16 MXU operands, f32 softmax/accumulation).
    out_bf16 = qkv_attention(q, k, v, params)
    jax.block_until_ready(out_bf16)
    ref_bf16 = reference(jnp.bfloat16)
    errbf = float(jnp.max(jnp.abs(out_bf16 - ref_bf16)))
    assert jnp.allclose(out_bf16, ref_bf16, atol=1e-2, rtol=1e-2), f"bf16 max abs err {errbf}"

    print("KERNEL_OK")
</pallas_src>

<mosaic_0001>
module attributes {stable_mosaic.version = 11 : i64} {
  func.func @_linear_kernel(%arg0: i32, %arg1: memref<384x128xf32, #tpu.memory_space<vmem>>, %arg2: memref<128x128xf32, #tpu.memory_space<vmem>>, %arg3: memref<1x128xf32, #tpu.memory_space<vmem>>, %arg4: memref<384x128xf32, #tpu.memory_space<vmem>>) attributes {dimension_semantics = [#tpu.dimension_semantics<parallel>], iteration_bounds = array<i64: 1>, scalar_prefetch = 0 : i64, scratch_operands = 0 : i64, tpu.core_type = #tpu.core_type<tc>, window_params = [{transform_indices = @transform_0, window_bounds = array<i64: 384, 128>}, {pipeline_mode = #tpu.pipeline_mode<synchronous>, transform_indices = @transform_1, window_bounds = array<i64: 128, 128>}, {pipeline_mode = #tpu.pipeline_mode<synchronous>, transform_indices = @transform_2, window_bounds = array<i64: 1, 128>}, {transform_indices = @transform_3, window_bounds = array<i64: 384, 128>}]} {
    %c0 = arith.constant 0 : index
    %c0_0 = arith.constant 0 : index
    %0 = vector.load %arg1[%c0, %c0_0] : memref<384x128xf32, #tpu.memory_space<vmem>>, vector<384x128xf32>
    %c0_1 = arith.constant 0 : index
    %c0_2 = arith.constant 0 : index
    %1 = vector.load %arg2[%c0_1, %c0_2] : memref<128x128xf32, #tpu.memory_space<vmem>>, vector<128x128xf32>
    %cst = arith.constant dense<0.000000e+00> : vector<384x128xf32>
    %2 = tpu.matmul %0, %1, %cst {dimension_numbers = #tpu.dot_dimension_numbers<[1], [0], [0], [1], [0, 0, 1, 1], [], []>} : vector<384x128xf32>, vector<128x128xf32>, vector<384x128xf32> -> vector<384x128xf32>
    %c0_3 = arith.constant 0 : index
    %c0_4 = arith.constant 0 : index
    %3 = vector.load %arg3[%c0_3, %c0_4] : memref<1x128xf32, #tpu.memory_space<vmem>>, vector<1x128xf32>
    %4 = vector.broadcast %3 : vector<1x128xf32> to vector<384x128xf32>
    %5 = arith.addf %2, %4 : vector<384x128xf32>
    %c0_5 = arith.constant 0 : index
    %c0_6 = arith.constant 0 : index
    %6 = vector.load %arg4[%c0_5, %c0_6] : memref<384x128xf32, #tpu.memory_space<vmem>>, vector<384x128xf32>
    tpu.vector_store %arg4[%c0_5, %c0_6], %5 {strides = array<i32>} : memref<384x128xf32, #tpu.memory_space<vmem>>, vector<384x128xf32>,
    return
  }
  func.func @transform_0(%arg0: i32) -> (i32, i32) {
    %c0_i32 = arith.constant 0 : i32
    %c0_i32_0 = arith.constant 0 : i32
    return %arg0, %c0_i32 : i32, i32
  }
  func.func @transform_1(%arg0: i32) -> (i32, i32) {
    %c0_i32 = arith.constant 0 : i32
    %c0_i32_0 = arith.constant 0 : i32
    %c0_i32_1 = arith.constant 0 : i32
    return %c0_i32, %c0_i32_0 : i32, i32
  }
  func.func @transform_2(%arg0: i32) -> (i32, i32) {
    %c0_i32 = arith.constant 0 : i32
    %c0_i32_0 = arith.constant 0 : i32
    %c0_i32_1 = arith.constant 0 : i32
    return %c0_i32, %c0_i32_0 : i32, i32
  }
  func.func @transform_3(%arg0: i32) -> (i32, i32) {
    %c0_i32 = arith.constant 0 : i32
    %c0_i32_0 = arith.constant 0 : i32
    return %arg0, %c0_i32 : i32, i32
  }
}

</mosaic_0001>

<llo_original>
// kernel: tpu_custom_call.1
$region0: #{tpu_custom_call.1}
  #allocation0 [shape = 'u32[]', space=smem, size = 0x4, offset = 0x4, fixed_abs, tag = 'smem constant byte address 0x4 - core index']
  #allocation1 [shape = 'u32[144,128]{1,0:T(1,128)}', space=vmem, size = 0x12000, scoped, tag = 'internal scratch']
  %s0 = inlined_call_operand.hbm [shape: f32[384,128], index: 0, kind: input, shape index: {}]
  %s1 = inlined_call_operand.hbm [shape: f32[128,128], index: 1, kind: input, shape index: {}]
  %s2 = inlined_call_operand.vmem [shape: f32[1,128], index: 2, kind: input, shape index: {}]
  %s3 = inlined_call_operand.hbm [shape: f32[384,128], index: 3, kind: output, shape index: {}]
  %s4 = sld [smem:[#allocation0]]
  $region30: #{tpu_custom_call.1} parent=0
    _
  %s6 = ssub.s32 1, %s4
  %s7 = scalar_select 0, %s6, %s4
  $region1: #{tpu_custom_call.1} parent=0
    #allocation2 [shape = 'u8[196608]{0}', space=vmem, size = 0x30000, scoped, tag = 'input window, operand 0, single buffered']
    #allocation3 [shape = 's32[1]{0}', space=sflag, size = 0x4, scoped, tag = 'scoped memory for tpu_custom_call.1']
    #allocation4 [shape = 's32[1]{0}', space=sflag, size = 0x4, scoped, tag = 'scoped memory for tpu_custom_call.1']
    #allocation5 [shape = 'u8[65536]{0}', space=vmem, size = 0x10000, scoped, tag = 'input window, operand 1, single buffered']
    #allocation6 [shape = 's32[1]{0}', space=sflag, size = 0x4, scoped, tag = 'scoped memory for tpu_custom_call.1']
    #allocation7 [shape = 'u8[196608]{0}', space=vmem, size = 0x30000, scoped, tag = 'output window, operand 0, single buffered']
    %8 = vsyncpa [#allocation3], 0
    %9 = vsyncpa [#allocation6], 0
    %10 = vsyncpa [#allocation4], 0
    // Predicated region
    $region2: #{tpu_custom_call.1} parent=1 // pred_check
      _
    $region3: #{tpu_custom_call.1} parent=1 // pred_check_branch
      %12 = sbr.rel (0) target = $region5
    $region4: #{tpu_custom_call.1} parent=1 // pred_region
      %s14 = ssub.s32 6144, 6144
      %15 = vsyncadd [#allocation3], %s14
      %s16 = sshll.u32 [#allocation2], 4
      %s17 = int_to_ptr.vmem [resolvable:$true] %s16
      %22 = dma.hbm_to_vmem [thread:$0]  %s0, 6144, %s17, [#allocation3], 128, 128, 8
    $region5: #{tpu_custom_call.1} parent=1 // pred_fallthru
      _
    // Predicated region
    $region6: #{tpu_custom_call.1} parent=1 // pred_check
      _
    $region7: #{tpu_custom_call.1} parent=1 // pred_check_branch
      %24 = sbr.rel (0) target = $region9
    $region8: #{tpu_custom_call.1} parent=1 // pred_region
      %s26 = ssub.s32 2048, 2048
      %27 = vsyncadd [#allocation6], %s26
      %s28 = sshll.u32 [#allocation5], 4
      %s29 = int_to_ptr.vmem [resolvable:$true] %s28
      %34 = dma.hbm_to_vmem [thread:$0]  %s1, 2048, %s29, [#allocation6], 128, 128, 8
    $region9: #{tpu_custom_call.1} parent=1 // pred_fallthru
      _
    // Predicated region
    $region10: #{tpu_custom_call.1} parent=1 // pred_check
      _
    $region11: #{tpu_custom_call.1} parent=1 // pred_check_branch
      %36 = sbr.rel (0) target = $region13
    $region12: #{tpu_custom_call.1} parent=1 // pred_region
      _
    $region13: #{tpu_custom_call.1} parent=1 // pred_fallthru
      _
    // Predicated region
    $region14: #{tpu_custom_call.1} parent=1 // pred_check
      _
    $region15: #{tpu_custom_call.1} parent=1 // pred_check_branch
      %38 = sbr.rel (0) target = $region17
    $region16: #{tpu_custom_call.1} parent=1 // pred_region
      %39 = dma.done [#allocation3], 6144
    $region17: #{tpu_custom_call.1} parent=1 // pred_fallthru
      _
    // Predicated region
    $region18: #{tpu_custom_call.1} parent=1 // pred_check
      _
    $region19: #{tpu_custom_call.1} parent=1 // pred_check_branch
      %41 = sbr.rel (0) target = $region21
    $region20: #{tpu_custom_call.1} parent=1 // pred_region
      %42 = dma.done [#allocation6], 2048
    $region21: #{tpu_custom_call.1} parent=1 // pred_fallthru
      _
    %v43 = vld [vmem:[#allocation2] sm:$0xff]
    %v44 = vld [vmem:[#allocation2 + $0x8] sm:$0xff]
    %v45 = vld [vmem:[#allocation2 + $0x10] sm:$0xff]
    %v46 = vld [vmem:[#allocation2 + $0x18] sm:$0xff]
    %v47 = vld [vmem:[#allocation2 + $0x20] sm:$0xff]
    %v48 = vld [vmem:[#allocation2 + $0x28] sm:$0xff]
    %v49 = vld [vmem:[#allocation2 + $0x30] sm:$0xff]
    %v50 = vld [vmem:[#allocation2 + $0x38] sm:$0xff]
    %v51 = vld [vmem:[#allocation2 + $0x40] sm:$0xff]
    %v52 = vld [vmem:[#allocation2 + $0x48] sm:$0xff]
    %v53 = vld [vmem:[#allocation2 + $0x50] sm:$0xff]
    %v54 = vld [vmem:[#allocation2 + $0x58] sm:$0xff]
    %v55 = vld [vmem:[#allocation2 + $0x60] sm:$0xff]
    %v56 = vld [vmem:[#allocation2 + $0x68] sm:$0xff]
    %v57 = vld [vmem:[#allocation2 + $0x70] sm:$0xff]
    %v58 = vld [vmem:[#allocation2 + $0x78] sm:$0xff]
    %v59 = vld [vmem:[#allocation2 + $0x80] sm:$0xff]
    %v60 = vld [vmem:[#allocation2 + $0x88] sm:$0xff]
    %v61 = vld [vmem:[#allocation2 + $0x90] sm:$0xff]
    %v62 = vld [vmem:[#allocation2 + $0x98] sm:$0xff]
    %v63 = vld [vmem:[#allocation2 + $0xa0] sm:$0xff]
    %v64 = vld [vmem:[#allocation2 + $0xa8] sm:$0xff]
    %v65 = vld [vmem:[#allocation2 + $0xb0] sm:$0xff]
    %v66 = vld [vmem:[#allocation2 + $0xb8] sm:$0xff]
    %v67 = vld [vmem:[#allocation2 + $0xc0] sm:$0xff]
    %v68 = vld [vmem:[#allocation2 + $0xc8] sm:$0xff]
    %v69 = vld [vmem:[#allocation2 + $0xd0] sm:$0xff]
    %v70 = vld [vmem:[#allocation2 + $0xd8] sm:$0xff]
    %v71 = vld [vmem:[#allocation2 + $0xe0] sm:$0xff]
    %v72 = vld [vmem:[#allocation2 + $0xe8] sm:$0xff]
    %v73 = vld [vmem:[#allocation2 + $0xf0] sm:$0xff]
    %v74 = vld [vmem:[#allocation2 + $0xf8] sm:$0xff]
    %v75 = vld [vmem:[#allocation2 + $0x100] sm:$0xff]
    %v76 = vld [vmem:[#allocation2 + $0x108] sm:$0xff]
    %v77 = vld [vmem:[#allocation2 + $0x110] sm:$0xff]
    %v78 = vld [vmem:[#allocation2 + $0x118] sm:$0xff]
    %v79 = vld [vmem:[#allocation2 + $0x120] sm:$0xff]
    %v80 = vld [vmem:[#allocation2 + $0x128] sm:$0xff]
    %v81 = vld [vmem:[#allocation2 + $0x130] sm:$0xff]
    %v82 = vld [vmem:[#allocation2 + $0x138] sm:$0xff]
    %v83 = vld [vmem:[#allocation2 + $0x140] sm:$0xff]
    %v84 = vld [vmem:[#allocation2 + $0x148] sm:$0xff]
    %v85 = vld [vmem:[#allocation2 + $0x150] sm:$0xff]
    %v86 = vld [vmem:[#allocation2 + $0x158] sm:$0xff]
    %v87 = vld [vmem:[#allocation2 + $0x160] sm:$0xff]
    %v88 = vld [vmem:[#allocation2 + $0x168] sm:$0xff]
    %v89 = vld [vmem:[#allocation2 + $0x170] sm:$0xff]
    %v90 = vld [vmem:[#allocation2 + $0x178] sm:$0xff]
    %v91 = vld [vmem:[#allocation5] sm:$0xff]
    %v92 = vld [vmem:[#allocation5 + $0x8] sm:$0xff]
    %v93 = vld [vmem:[#allocation5 + $0x10] sm:$0xff]
    %v94 = vld [vmem:[#allocation5 + $0x18] sm:$0xff]
    %v95 = vld [vmem:[#allocation5 + $0x20] sm:$0xff]
    %v96 = vld [vmem:[#allocation5 + $0x28] sm:$0xff]
    %v97 = vld [vmem:[#allocation5 + $0x30] sm:$0xff]
    %v98 = vld [vmem:[#allocation5 + $0x38] sm:$0xff]
    %v99 = vld [vmem:[#allocation5 + $0x40] sm:$0xff]
    %v100 = vld [vmem:[#allocation5 + $0x48] sm:$0xff]
    %v101 = vld [vmem:[#allocation5 + $0x50] sm:$0xff]
    %v102 = vld [vmem:[#allocation5 + $0x58] sm:$0xff]
    %v103 = vld [vmem:[#allocation5 + $0x60] sm:$0xff]
    %v104 = vld [vmem:[#allocation5 + $0x68] sm:$0xff]
    %v105 = vld [vmem:[#allocation5 + $0x70] sm:$0xff]
    %v106 = vld [vmem:[#allocation5 + $0x78] sm:$0xff]
    %v107 = vld [vmem:[%s2] sm:$0x1]
    %v109 = vlaneseq
    %v110 = vshrl.u32 %v109, 7
    %v111 = vsub.s32 0, %v110
    %v112 = vrot.slane %v107, %v111
    %114 = vmatprep.subr.mxu0 0.0
    %115 = vmatpush1.msra.mxu0 %v91
    %116 = vmatprep.subr.mxu0 0.0
    %117 = vmatpush1.msra.mxu0 %v92
    %118 = vmatprep.subr.mxu0 0.0
    %119 = vmatpush1.msra.mxu0 %v93
    %120 = vmatprep.subr.mxu0 0.0
    %121 = vmatpush1.msra.mxu0 %v94
    %122 = vmatprep.subr.mxu0 0.0
    %123 = vmatpush1.msra.mxu0 %v95
    %124 = vmatprep.subr.mxu0 0.0
    %125 = vmatpush1.msra.mxu0 %v96
    %126 = vmatprep.subr.mxu0 0.0
    %127 = vmatpush1.msra.mxu0 %v97
    %128 = vmatprep.subr.mxu0 0.0
    %129 = vmatpush1.msra.mxu0 %v98
    %130 = vmatprep.subr.mxu0 0.0
    %131 = vmatpush1.msra.mxu0 %v99
    %132 = vmatprep.subr.mxu0 0.0
    %133 = vmatpush1.msra.mxu0 %v100
    %134 = vmatprep.subr.mxu0 0.0
    %135 = vmatpush1.msra.mxu0 %v101
    %136 = vmatprep.subr.mxu0 0.0
    %137 = vmatpush1.msra.mxu0 %v102
    %138 = vmatprep.subr.mxu0 0.0
    %139 = vmatpush1.msra.mxu0 %v103
    %140 = vmatprep.subr.mxu0 0.0
    %141 = vmatpush1.msra.mxu0 %v104
    %142 = vmatprep.subr.mxu0 0.0
    %143 = vmatpush1.msra.mxu0 %v105
    %144 = vmatprep.subr.mxu0 0.0
    %145 = vmatpush1.msra.mxu0 %v106
    %146 = vmatprep.subr.mxu0 0.0
    %147 = vmatpush1.msra.mxu0 0.0
    %148 = vmatprep.subr.mxu0 0.0
    %149 = vmatpush1.msra.mxu0 0.0
    %150 = vmatprep.subr.mxu0 0.0
    %151 = vmatpush1.msra.mxu0 0.0
    %152 = vmatprep.subr.mxu0 0.0
    %153 = vmatpush1.msra.mxu0 0.0
    %154 = vmatprep.subr.mxu0 0.0
    %155 = vmatpush1.msra.mxu0 0.0
    %156 = vmatprep.subr.mxu0 0.0
    %157 = vmatpush1.msra.mxu0 0.0
    %158 = vmatprep.subr.mxu0 0.0
    %159 = vmatpush1.msra.mxu0 0.0
    %160 = vmatprep.subr.mxu0 0.0
    %161 = vmatpush1.msra.mxu0 0.0
    %162 = vmatprep.subr.mxu0 0.0
    %163 = vmatpush1.msra.mxu0 0.0
    %164 = vmatprep.subr.mxu0 0.0
    %165 = vmatpush1.msra.mxu0 0.0
    %166 = vmatprep.subr.mxu0 0.0
    %167 = vmatpush1.msra.mxu0 0.0
    %168 = vmatprep.subr.mxu0 0.0
    %169 = vmatpush1.msra.mxu0 0.0
    %170 = vmatprep.subr.mxu0 0.0
    %171 = vmatpush1.msra.mxu0 0.0
    %172 = vmatprep.subr.mxu0 0.0
    %173 = vmatpush1.msra.mxu0 0.0
    %174 = vmatprep.subr.mxu0 0.0
    %175 = vmatpush1.msra.mxu0 0.0
    %176 = vmatprep.subr.mxu0 0.0
    %177 = vmatpush1.msra.mxu0 0.0
    %178 = vmatprep.mubr.f32.mxu0 0.0
    %179 = vmatmul.mubr.f32.gmra.mrb[0].mxu0 %v43
    %v180 = vpop.f32.mrb[0].mxu0
    %v181 = vadd.f32 %v112, %v180
    %v182 = vpop.f32.mrb[0].mxu0
    %183 = vmatprep.mubr.f32.mxu0 0.0
    %184 = vmatmul.mubr.f32.gmra.mrb[0].mxu0 %v44
    %v185 = vpop.f32.mrb[0].mxu0
    %v186 = vadd.f32 %v112, %v185
    %v187 = vpop.f32.mrb[0].mxu0
    %188 = vmatprep.mubr.f32.mxu0 0.0
    %189 = vmatmul.mubr.f32.gmra.mrb[0].mxu0 %v45
    %v190 = vpop.f32.mrb[0].mxu0
    %v191 = vadd.f32 %v112, %v190
    %v192 = vpop.f32.mrb[0].mxu0
    %193 = vmatprep.mubr.f32.mxu0 0.0
    %194 = vmatmul.mubr.f32.gmra.mrb[0].mxu0 %v46
    %v195 = vpop.f32.mrb[0].mxu0
    %v196 = vadd.f32 %v112, %v195
    %v197 = vpop.f32.mrb[0].mxu0
    %198 = vmatprep.mubr.f32.mxu0 0.0
    %199 = vmatmul.mubr.f32.gmra.mrb[0].mxu0 %v47
    %v200 = vpop.f32.mrb[0].mxu0
    %v201 = vadd.f32 %v112, %v200
    %v202 = vpop.f32.mrb[0].mxu0
    %203 = vmatprep.mubr.f32.mxu0 0.0
    %204 = vmatmul.mubr.f32.gmra.mrb[0].mxu0 %v48
    %v205 = vpop.f32.mrb[0].mxu0
    %v206 = vadd.f32 %v112, %v205
    %v207 = vpop.f32.mrb[0].mxu0
    %208 = vmatprep.mubr.f32.mxu0 0.0
    %209 = vmatmul.mubr.f32.gmra.mrb[0].mxu0 %v49
    %v210 = vpop.f32.mrb[0].mxu0
    %v211 = vadd.f32 %v112, %v210
    %v212 = vpop.f32.mrb[0].mxu0
    %213 = vmatprep.mubr.f32.mxu0 0.0
    %214 = vmatmul.mubr.f32.gmra.mrb[0].mxu0 %v50
    %v215 = vpop.f32.mrb[0].mxu0
    %v216 = vadd.f32 %v112, %v215
    %v217 = vpop.f32.mrb[0].mxu0
    %218 = vmatprep.mubr.f32.mxu0 0.0
    %219 = vmatmul.mubr.f32.gmra.mrb[0].mxu0 %v51
    %v220 = vpop.f32.mrb[0].mxu0
    %v221 = vadd.f32 %v112, %v220
    %v222 = vpop.f32.mrb[0].mxu0
    %223 = vmatprep.mubr.f32.mxu0 0.0
    %224 = vmatmul.mubr.f32.gmra.mrb[0].mxu0 %v52
    %v225 = vpop.f32.mrb[0].mxu0
    %v226 = vadd.f32 %v112, %v225
    %v227 = vpop.f32.mrb[0].mxu0
    %228 = vmatprep.mubr.f32.mxu0 0.0
    %229 = vmatmul.mubr.f32.gmra.mrb[0].mxu0 %v53
    %v230 = vpop.f32.mrb[0].mxu0
    %v231 = vadd.f32 %v112, %v230
    %v232 = vpop.f32.mrb[0].mxu0
    %233 = vmatprep.mubr.f32.mxu0 0.0
    %234 = vmatmul.mubr.f32.gmra.mrb[0].mxu0 %v54
    %v235 = vpop.f32.mrb[0].mxu0
    %v236 = vadd.f32 %v112, %v235
    %v237 = vpop.f32.mrb[0].mxu0
    %238 = vmatprep.mubr.f32.mxu0 0.0
    %239 = vmatmul.mubr.f32.gmra.mrb[0].mxu0 %v55
    %v240 = vpop.f32.mrb[0].mxu0
    %v241 = vadd.f32 %v112, %v240
    %v242 = vpop.f32.mrb[0].mxu0
    %243 = vmatprep.mubr.f32.mxu0 0.0
    %244 = vmatmul.mubr.f32.gmra.mrb[0].mxu0 %v56
    %v245 = vpop.f32.mrb[0].mxu0
    %v246 = vadd.f32 %v112, %v245
    %v247 = vpop.f32.mrb[0].mxu0
    %248 = vmatprep.mubr.f32.mxu0 0.0
    %249 = vmatmul.mubr.f32.gmra.mrb[0].mxu0 %v57
    %v250 = vpop.f32.mrb[0].mxu0
    %v251 = vadd.f32 %v112, %v250
    %v252 = vpop.f32.mrb[0].mxu0
    %253 = vmatprep.mubr.f32.mxu0 0.0
    %254 = vmatmul.mubr.f32.gmra.mrb[0].mxu0 %v58
    %v255 = vpop.f32.mrb[0].mxu0
    %v256 = vadd.f32 %v112, %v255
    %v257 = vpop.f32.mrb[0].mxu0
    %258 = vmatprep.mubr.f32.mxu0 0.0
    %259 = vmatmul.mubr.f32.gmra.mrb[0].mxu0 %v59
    %v260 = vpop.f32.mrb[0].mxu0
    %v261 = vadd.f32 %v112, %v260
    %v262 = vpop.f32.mrb[0].mxu0
    %263 = vmatprep.mubr.f32.mxu0 0.0
    %264 = vmatmul.mubr.f32.gmra.mrb[0].mxu0 %v60
    %v265 = vpop.f32.mrb[0].mxu0
    %v266 = vadd.f32 %v112, %v265
    %v267 = vpop.f32.mrb[0].mxu0
    %268 = vmatprep.mubr.f32.mxu0 0.0
    %269 = vmatmul.mubr.f32.gmra.mrb[0].mxu0 %v61
    %v270 = vpop.f32.mrb[0].mxu0
    %v271 = vadd.f32 %v112, %v270
    %v272 = vpop.f32.mrb[0].mxu0
    %273 = vmatprep.mubr.f32.mxu0 0.0
    %274 = vmatmul.mubr.f32.gmra.mrb[0].mxu0 %v62
    %v275 = vpop.f32.mrb[0].mxu0
    %v276 = vadd.f32 %v112, %v275
    %v277 = vpop.f32.mrb[0].mxu0
    %278 = vmatprep.mubr.f32.mxu0 0.0
    %279 = vmatmul.mubr.f32.gmra.mrb[0].mxu0 %v63
    %v280 = vpop.f32.mrb[0].mxu0
    %v281 = vadd.f32 %v112, %v280
    %v282 = vpop.f32.mrb[0].mxu0
    %283 = vmatprep.mubr.f32.mxu0 0.0
    %284 = vmatmul.mubr.f32.gmra.mrb[0].mxu0 %v64
    %v285 = vpop.f32.mrb[0].mxu0
    %v286 = vadd.f32 %v112, %v285
    %v287 = vpop.f32.mrb[0].mxu0
    %288 = vmatprep.mubr.f32.mxu0 0.0
    %289 = vmatmul.mubr.f32.gmra.mrb[0].mxu0 %v65
    %v290 = vpop.f32.mrb[0].mxu0
    %v291 = vadd.f32 %v112, %v290
    %v292 = vpop.f32.mrb[0].mxu0
    %293 = vmatprep.mubr.f32.mxu0 0.0
    %294 = vmatmul.mubr.f32.gmra.mrb[0].mxu0 %v66
    %v295 = vpop.f32.mrb[0].mxu0
    %v296 = vadd.f32 %v112, %v295
    %v297 = vpop.f32.mrb[0].mxu0
    %298 = vmatprep.mubr.f32.mxu0 0.0
    %299 = vmatmul.mubr.f32.gmra.mrb[0].mxu0 %v67
    %v300 = vpop.f32.mrb[0].mxu0
    %v301 = vadd.f32 %v112, %v300
    %v302 = vpop.f32.mrb[0].mxu0
    %303 = vmatprep.mubr.f32.mxu0 0.0
    %304 = vmatmul.mubr.f32.gmra.mrb[0].mxu0 %v68
    %v305 = vpop.f32.mrb[0].mxu0
    %v306 = vadd.f32 %v112, %v305
    %v307 = vpop.f32.mrb[0].mxu0
    %308 = vmatprep.mubr.f32.mxu0 0.0
    %309 = vmatmul.mubr.f32.gmra.mrb[0].mxu0 %v69
    %v310 = vpop.f32.mrb[0].mxu0
    %v311 = vadd.f32 %v112, %v310
    %v312 = vpop.f32.mrb[0].mxu0
    %313 = vmatprep.mubr.f32.mxu0 0.0
    %314 = vmatmul.mubr.f32.gmra.mrb[0].mxu0 %v70
    %v315 = vpop.f32.mrb[0].mxu0
    %v316 = vadd.f32 %v112, %v315
    %v317 = vpop.f32.mrb[0].mxu0
    %318 = vmatprep.mubr.f32.mxu0 0.0
    %319 = vmatmul.mubr.f32.gmra.mrb[0].mxu0 %v71
    %v320 = vpop.f32.mrb[0].mxu0
    %v321 = vadd.f32 %v112, %v320
    %v322 = vpop.f32.mrb[0].mxu0
    %323 = vmatprep.mubr.f32.mxu0 0.0
    %324 = vmatmul.mubr.f32.gmra.mrb[0].mxu0 %v72
    %v325 = vpop.f32.mrb[0].mxu0
    %v326 = vadd.f32 %v112, %v325
    %v327 = vpop.f32.mrb[0].mxu0
    %328 = vmatprep.mubr.f32.mxu0 0.0
    %329 = vmatmul.mubr.f32.gmra.mrb[0].mxu0 %v73
    %v330 = vpop.f32.mrb[0].mxu0
    %v331 = vadd.f32 %v112, %v330
    %v332 = vpop.f32.mrb[0].mxu0
    %333 = vmatprep.mubr.f32.mxu0 0.0
    %334 = vmatmul.mubr.f32.gmra.mrb[0].mxu0 %v74
    %v335 = vpop.f32.mrb[0].mxu0
    %v336 = vadd.f32 %v112, %v335
    %v337 = vpop.f32.mrb[0].mxu0
    %338 = vmatprep.mubr.f32.mxu0 0.0
    %339 = vmatmul.mubr.f32.gmra.mrb[0].mxu0 %v75
    %v340 = vpop.f32.mrb[0].mxu0
    %v341 = vadd.f32 %v112, %v340
    %v342 = vpop.f32.mrb[0].mxu0
    %343 = vmatprep.mubr.f32.mxu0 0.0
    %344 = vmatmul.mubr.f32.gmra.mrb[0].mxu0 %v76
    %v345 = vpop.f32.mrb[0].mxu0
    %v346 = vadd.f32 %v112, %v345
    %v347 = vpop.f32.mrb[0].mxu0
    %348 = vmatprep.mubr.f32.mxu0 0.0
    %349 = vmatmul.mubr.f32.gmra.mrb[0].mxu0 %v77
    %v350 = vpop.f32.mrb[0].mxu0
    %v351 = vadd.f32 %v112, %v350
    %v352 = vpop.f32.mrb[0].mxu0
    %353 = vmatprep.mubr.f32.mxu0 0.0
    %354 = vmatmul.mubr.f32.gmra.mrb[0].mxu0 %v78
    %v355 = vpop.f32.mrb[0].mxu0
    %v356 = vadd.f32 %v112, %v355
    %v357 = vpop.f32.mrb[0].mxu0
    %358 = vmatprep.mubr.f32.mxu0 0.0
    %359 = vmatmul.mubr.f32.gmra.mrb[0].mxu0 %v79
    %v360 = vpop.f32.mrb[0].mxu0
    %v361 = vadd.f32 %v112, %v360
    %v362 = vpop.f32.mrb[0].mxu0
    %363 = vmatprep.mubr.f32.mxu0 0.0
    %364 = vmatmul.mubr.f32.gmra.mrb[0].mxu0 %v80
    %v365 = vpop.f32.mrb[0].mxu0
    %v366 = vadd.f32 %v112, %v365
    %v367 = vpop.f32.mrb[0].mxu0
    %368 = vmatprep.mubr.f32.mxu0 0.0
    %369 = vmatmul.mubr.f32.gmra.mrb[0].mxu0 %v81
    %v370 = vpop.f32.mrb[0].mxu0
    %v371 = vadd.f32 %v112, %v370
    %v372 = vpop.f32.mrb[0].mxu0
    %373 = vmatprep.mubr.f32.mxu0 0.0
    %374 = vmatmul.mubr.f32.gmra.mrb[0].mxu0 %v82
    %v375 = vpop.f32.mrb[0].mxu0
    %v376 = vadd.f32 %v112, %v375
    %v377 = vpop.f32.mrb[0].mxu0
    %378 = vmatprep.mubr.f32.mxu0 0.0
    %379 = vmatmul.mubr.f32.gmra.mrb[0].mxu0 %v83
    %v380 = vpop.f32.mrb[0].mxu0
    %v381 = vadd.f32 %v112, %v380
    %v382 = vpop.f32.mrb[0].mxu0
    %383 = vmatprep.mubr.f32.mxu0 0.0
    %384 = vmatmul.mubr.f32.gmra.mrb[0].mxu0 %v84
    %v385 = vpop.f32.mrb[0].mxu0
    %v386 = vadd.f32 %v112, %v385
    %v387 = vpop.f32.mrb[0].mxu0
    %388 = vmatprep.mubr.f32.mxu0 0.0
    %389 = vmatmul.mubr.f32.gmra.mrb[0].mxu0 %v85
    %v390 = vpop.f32.mrb[0].mxu0
    %v391 = vadd.f32 %v112, %v390
    %v392 = vpop.f32.mrb[0].mxu0
    %393 = vmatprep.mubr.f32.mxu0 0.0
    %394 = vmatmul.mubr.f32.gmra.mrb[0].mxu0 %v86
    %v395 = vpop.f32.mrb[0].mxu0
    %v396 = vadd.f32 %v112, %v395
    %v397 = vpop.f32.mrb[0].mxu0
    %398 = vmatprep.mubr.f32.mxu0 0.0
    %399 = vmatmul.mubr.f32.gmra.mrb[0].mxu0 %v87
    %v400 = vpop.f32.mrb[0].mxu0
    %v401 = vadd.f32 %v112, %v400
    %v402 = vpop.f32.mrb[0].mxu0
    %403 = vmatprep.mubr.f32.mxu0 0.0
    %404 = vmatmul.mubr.f32.gmra.mrb[0].mxu0 %v88
    %v405 = vpop.f32.mrb[0].mxu0
    %v406 = vadd.f32 %v112, %v405
    %v407 = vpop.f32.mrb[0].mxu0
    %408 = vmatprep.mubr.f32.mxu0 0.0
    %409 = vmatmul.mubr.f32.gmra.mrb[0].mxu0 %v89
    %v410 = vpop.f32.mrb[0].mxu0
    %v411 = vadd.f32 %v112, %v410
    %v412 = vpop.f32.mrb[0].mxu0
    %413 = vmatprep.mubr.f32.mxu0 0.0
    %414 = vmatmul.mubr.f32.gmra.mrb[0].mxu0 %v90
    %v415 = vpop.f32.mrb[0].mxu0
    %v416 = vadd.f32 %v112, %v415
    %v417 = vpop.f32.mrb[0].mxu0
    %418 = vdwg.mxu0
    %419 = vst [vmem:[#allocation7] sm:$0xff] %v181
    %420 = vst [vmem:[#allocation7 + $0x8] sm:$0xff] %v186
    %421 = vst [vmem:[#allocation7 + $0x10] sm:$0xff] %v191
    %422 = vst [vmem:[#allocation7 + $0x18] sm:$0xff] %v196
    %423 = vst [vmem:[#allocation7 + $0x20] sm:$0xff] %v201
    %424 = vst [vmem:[#allocation7 + $0x28] sm:$0xff] %v206
    %425 = vst [vmem:[#allocation7 + $0x30] sm:$0xff] %v211
    %426 = vst [vmem:[#allocation7 + $0x38] sm:$0xff] %v216
    %427 = vst [vmem:[#allocation7 + $0x40] sm:$0xff] %v221
    %428 = vst [vmem:[#allocation7 + $0x48] sm:$0xff] %v226
    %429 = vst [vmem:[#allocation7 + $0x50] sm:$0xff] %v231
    %430 = vst [vmem:[#allocation7 + $0x58] sm:$0xff] %v236
    %431 = vst [vmem:[#allocation7 + $0x60] sm:$0xff] %v241
    %432 = vst [vmem:[#allocation7 + $0x68] sm:$0xff] %v246
    %433 = vst [vmem:[#allocation7 + $0x70] sm:$0xff] %v251
    %434 = vst [vmem:[#allocation7 + $0x78] sm:$0xff] %v256
    %435 = vst [vmem:[#allocation7 + $0x80] sm:$0xff] %v261
    %436 = vst [vmem:[#allocation7 + $0x88] sm:$0xff] %v266
    %437 = vst [vmem:[#allocation7 + $0x90] sm:$0xff] %v271
    %438 = vst [vmem:[#allocation7 + $0x98] sm:$0xff] %v276
    %439 = vst [vmem:[#allocation7 + $0xa0] sm:$0xff] %v281
    %440 = vst [vmem:[#allocation7 + $0xa8] sm:$0xff] %v286
    %441 = vst [vmem:[#allocation7 + $0xb0] sm:$0xff] %v291
    %442 = vst [vmem:[#allocation7 + $0xb8] sm:$0xff] %v296
    %443 = vst [vmem:[#allocation7 + $0xc0] sm:$0xff] %v301
    %444 = vst [vmem:[#allocation7 + $0xc8] sm:$0xff] %v306
    %445 = vst [vmem:[#allocation7 + $0xd0] sm:$0xff] %v311
    %446 = vst [vmem:[#allocation7 + $0xd8] sm:$0xff] %v316
    %447 = vst [vmem:[#allocation7 + $0xe0] sm:$0xff] %v321
    %448 = vst [vmem:[#allocation7 + $0xe8] sm:$0xff] %v326
    %449 = vst [vmem:[#allocation7 + $0xf0] sm:$0xff] %v331
    %450 = vst [vmem:[#allocation7 + $0xf8] sm:$0xff] %v336
    %451 = vst [vmem:[#allocation7 + $0x100] sm:$0xff] %v341
    %452 = vst [vmem:[#allocation7 + $0x108] sm:$0xff] %v346
    %453 = vst [vmem:[#allocation7 + $0x110] sm:$0xff] %v351
    %454 = vst [vmem:[#allocation7 + $0x118] sm:$0xff] %v356
    %455 = vst [vmem:[#allocation7 + $0x120] sm:$0xff] %v361
    %456 = vst [vmem:[#allocation7 + $0x128] sm:$0xff] %v366
    %457 = vst [vmem:[#allocation7 + $0x130] sm:$0xff] %v371
    %458 = vst [vmem:[#allocation7 + $0x138] sm:$0xff] %v376
    %459 = vst [vmem:[#allocation7 + $0x140] sm:$0xff] %v381
    %460 = vst [vmem:[#allocation7 + $0x148] sm:$0xff] %v386
    %461 = vst [vmem:[#allocation7 + $0x150] sm:$0xff] %v391
    %462 = vst [vmem:[#allocation7 + $0x158] sm:$0xff] %v396
    %463 = vst [vmem:[#allocation7 + $0x160] sm:$0xff] %v401
    %464 = vst [vmem:[#allocation7 + $0x168] sm:$0xff] %v406
    %465 = vst [vmem:[#allocation7 + $0x170] sm:$0xff] %v411
    %466 = vst [vmem:[#allocation7 + $0x178] sm:$0xff] %v416
    // Predicated region
    $region22: #{tpu_custom_call.1} parent=1 // pred_check
      _
    $region23: #{tpu_custom_call.1} parent=1 // pred_check_branch
      %468 = sbr.rel (0) target = $region25
    $region24: #{tpu_custom_call.1} parent=1 // pred_region
      %s470 = ssub.s32 6144, 6144
      %471 = vsyncadd [#allocation4], %s470
      %s472 = sshll.u32 [#allocation7], 4
      %s473 = int_to_ptr.vmem [resolvable:$true] %s472
      %478 = dma.vmem_to_hbm [thread:$0]  %s473, 6144, %s3, [#allocation4], 128, 128, 8
    $region25: #{tpu_custom_call.1} parent=1 // pred_fallthru
      _
    // Predicated region
    $region26: #{tpu_custom_call.1} parent=1 // pred_check
      _
    $region27: #{tpu_custom_call.1} parent=1 // pred_check_branch
      %480 = sbr.rel (0) target = $region29
    $region28: #{tpu_custom_call.1} parent=1 // pred_region
      %481 = dma.done [#allocation4], 6144
    $region29: #{tpu_custom_call.1} parent=1 // pred_fallthru
      _
    %482 = vsyncpa [#allocation3], 1
    %483 = vsyncpa [#allocation6], 1
    %484 = vsyncpa [#allocation4], 1

</llo_original>
